<compile_context>
chip_gen: v6e
topology: v6e:2x2x1
jax: 0.10.0
libtpu: 0.0.40
codegen_flags: <defaults>
</compile_context>

<pallas_src>
import jax
import jax.numpy as jnp
from jax import lax
from jax.experimental import pallas as pl
from jax.experimental.pallas import tpu as pltpu


DROPOUT_P = 0.75
KEEP_PROB = 1.0 - DROPOUT_P     # 0.25
KEEP_SCALE = 1.0 / KEEP_PROB    # 4.0
DEFAULT_BLOCK_M = 256           # fills the 256-wide MXU rows on v6e/v7x


def _round_up(x: int, m: int) -> int:
    return ((x + m - 1) // m) * m


def _tile_and_pad(m: int, block_m: int = DEFAULT_BLOCK_M):
    tm = min(block_m, _round_up(m, 8))
    return tm, _round_up(m, tm)


def _attn_dropout_kernel(q_ref, k_ref, u_ref, o_ref):
    # q_ref: (TM, D) bf16 tile of x1
    # k_ref: (N, D)  bf16, full x2 (key and value), resident across the grid
    # u_ref: (TM, N) f32 uniform(0,1) draws for dropout
    # o_ref: (TM, D) f32 output tile
    q = q_ref[...] * 0.5        # fold the 0.5 score scale into the small operand (exact in bf16)
    k = k_ref[...]

    # scores = (0.5 * x1) @ x2^T, contracting the shared D axis directly (no transpose).
    s = lax.dot_general(
        q, k,
        dimension_numbers=(((1,), (1,)), ((), ())),
        preferred_element_type=jnp.float32,
    )                                                   # (TM, N) f32

    # Numerically stable softmax numerator; normalization deferred to a per-row
    # scalar applied AFTER the second matmul (mathematically identical).
    m = jnp.max(s, axis=-1, keepdims=True)
    e = jnp.exp(s - m)
    denom = jnp.sum(e, axis=-1, keepdims=True)          # (TM, 1)

    # Dropout on the un-normalized numerator: single fused mask + bf16 cast pass.
    masked_e = jnp.where(u_ref[...] < KEEP_PROB, e, 0.0).astype(jnp.bfloat16)

    out = jnp.dot(masked_e, k, preferred_element_type=jnp.float32)   # (TM, D)

    # Per-row scalar: dropout keep-scale / softmax denominator (exact divide).
    o_ref[...] = (out * (KEEP_SCALE / denom)).astype(o_ref.dtype)


def _kv_block_spec(n: int, d: int) -> pl.BlockSpec:
    """Resident k/v block: constant index_map, so single-buffer it when supported."""
    index_map = lambda i: (0, 0)
    if hasattr(pl, "Buffered"):
        try:
            return pl.BlockSpec((n, d), index_map, pipeline_mode=pl.Buffered(1))
        except TypeError:
            pass
    return pl.BlockSpec((n, d), index_map)


def model_forward(x1, x2, dropout_key, block_m: int = DEFAULT_BLOCK_M):
    """x1: (1, M, D), x2: (1, N, D) -> (1, M, D) float32."""
    assert x1.ndim == 3 and x2.ndim == 3
    B, M, D = x1.shape
    Bk, N, Dk = x2.shape
    assert B == Bk == 1, "module is exercised with batch = 1"
    assert D == Dk, "inner contraction dims must match"

    # Cast once here: halves HBM->VMEM traffic and the resident k/v VMEM footprint.
    q2d = x1[0].astype(jnp.bfloat16)
    k2d = x2[0].astype(jnp.bfloat16)

    tm, m_pad = _tile_and_pad(M, block_m)
    if m_pad != M:
        q2d = jnp.pad(q2d, ((0, m_pad - M), (0, 0)))

    # Dropout uniforms generated host-side (portable across TPU / interpret).
    # TODO(synk): not bit-identical to torch's RNG stream (same keep-prob / scale).
    u = jax.random.uniform(dropout_key, (m_pad, N), dtype=jnp.float32)

    grid = (m_pad // tm,)

    # VMEM budget: resident bf16 k/v (single-buffered) + double-buffered q/u/out
    # tiles + generous headroom for the (TM, N) in-kernel temporaries.
    vmem_bytes = (
        N * D * 2                # resident k/v, bf16
        + 2 * tm * D * 2         # q tiles, bf16, double-buffered
        + 2 * tm * N * 4         # dropout uniform tiles, f32, double-buffered
        + 2 * tm * D * 4         # output tiles, f32, double-buffered
        + 8 * tm * N * 4         # (TM, N) in-kernel temporaries headroom
    )
    vmem_limit = int(min(max(vmem_bytes, 32 * 1024 * 1024), 64 * 1024 * 1024))

    out2d = pl.pallas_call(
        _attn_dropout_kernel,
        out_shape=jax.ShapeDtypeStruct((m_pad, D), jnp.float32),
        grid=grid,
        in_specs=[
            pl.BlockSpec((tm, D), lambda i: (i, 0)),    # q tile
            _kv_block_spec(N, D),                       # k/v, full & resident
            pl.BlockSpec((tm, N), lambda i: (i, 0)),    # dropout uniforms tile
        ],
        out_specs=pl.BlockSpec((tm, D), lambda i: (i, 0)),
        compiler_params=pltpu.CompilerParams(
            dimension_semantics=("parallel",),
            vmem_limit_bytes=vmem_limit,
        ),
    )(q2d, k2d, u)

    return out2d[:M][None, ...]


if __name__ == "__main__":
    root = jax.random.PRNGKey(0)
    kx1, kx2, kdrop = jax.random.split(root, 3)

    # Small, self-consistent shapes (batch, seq, dim).
    # M=384 exercises padding (to 512) and a 2-step pipelined grid with tm=256.
    B, M, N, D = 1, 384, 128, 128
    x1 = jax.random.normal(kx1, (B, M, D), dtype=jnp.float32)
    x2 = jax.random.normal(kx2, (B, N, D), dtype=jnp.float32)

    out = model_forward(x1, x2, kdrop)
    out = jax.block_until_ready(out)

    assert out.shape == (B, M, D), out.shape
    assert bool(jnp.all(jnp.isfinite(out)))

    # Reference: the dropout mask is reproducible from kdrop, so the full
    # forward (matmul -> *0.5 -> softmax -> dropout -> matmul) can be checked.
    tm, m_pad = _tile_and_pad(M)
    u = jax.random.uniform(kdrop, (m_pad, N), dtype=jnp.float32)[:M]
    q32 = x1[0].astype(jnp.bfloat16).astype(jnp.float32)
    k32 = x2[0].astype(jnp.bfloat16).astype(jnp.float32)
    s_ref = (q32 @ k32.T) * 0.5
    p_ref = jax.nn.softmax(s_ref, axis=-1)
    v4_ref = jnp.where(u < KEEP_PROB, p_ref, 0.0) * KEEP_SCALE
    out_ref = v4_ref @ k32

    err = float(jnp.max(jnp.abs(out[0] - out_ref)))
    ref_scale = float(jnp.max(jnp.abs(out_ref))) + 1e-6
    assert err / ref_scale < 5e-2, (err, ref_scale)

    print("KERNEL_OK")
</pallas_src>

<mosaic_0001>
module attributes {stable_mosaic.version = 11 : i64} {
  func.func @_attn_dropout_kernel(%arg0: i32, %arg1: memref<256x128xbf16, #tpu.memory_space<vmem>>, %arg2: memref<128x128xbf16, #tpu.memory_space<vmem>>, %arg3: memref<256x128xf32, #tpu.memory_space<vmem>>, %arg4: memref<256x128xf32, #tpu.memory_space<vmem>>) attributes {dimension_semantics = [#tpu.dimension_semantics<parallel>], iteration_bounds = array<i64: 2>, scalar_prefetch = 0 : i64, scratch_operands = 0 : i64, tpu.core_type = #tpu.core_type<tc>, window_params = [{transform_indices = @transform_0, window_bounds = array<i64: 256, 128>}, {pipeline_mode = #tpu.pipeline_mode<synchronous>, transform_indices = @transform_1, window_bounds = array<i64: 128, 128>}, {transform_indices = @transform_2, window_bounds = array<i64: 256, 128>}, {transform_indices = @transform_3, window_bounds = array<i64: 256, 128>}]} {
    %c0 = arith.constant 0 : index
    %c0_0 = arith.constant 0 : index
    %0 = vector.load %arg1[%c0, %c0_0] : memref<256x128xbf16, #tpu.memory_space<vmem>>, vector<256x128xbf16>
    %cst = arith.constant 5.000000e-01 : bf16
    %1 = vector.broadcast %cst : bf16 to vector<256x128xbf16>
    %2 = arith.mulf %0, %1 : vector<256x128xbf16>
    %c0_1 = arith.constant 0 : index
    %c0_2 = arith.constant 0 : index
    %3 = vector.load %arg2[%c0_1, %c0_2] : memref<128x128xbf16, #tpu.memory_space<vmem>>, vector<128x128xbf16>
    %cst_3 = arith.constant dense<0.000000e+00> : vector<256x128xf32>
    %4 = tpu.matmul %2, %3, %cst_3 {dimension_numbers = #tpu.dot_dimension_numbers<[1], [1], [0], [0], [0, 0, 1, 0], [], []>} : vector<256x128xbf16>, vector<128x128xbf16>, vector<256x128xf32> -> vector<256x128xf32>
    %cst_4 = arith.constant dense<0xFF800000> : vector<256xf32>
    %5 = vector.multi_reduction <maximumf>, %4, %cst_4 [1] : vector<256x128xf32> to vector<256xf32>
    %6 = vector.shape_cast %5 : vector<256xf32> to vector<256x1xf32>
    %7 = vector.broadcast %6 : vector<256x1xf32> to vector<256x128xf32>
    %8 = arith.subf %4, %7 : vector<256x128xf32>
    %9 = math.exp %8 : vector<256x128xf32>
    %cst_5 = arith.constant dense<0.000000e+00> : vector<256xf32>
    %10 = vector.multi_reduction <add>, %9, %cst_5 [1] : vector<256x128xf32> to vector<256xf32>
    %11 = vector.shape_cast %10 : vector<256xf32> to vector<256x1xf32>
    %c0_6 = arith.constant 0 : index
    %c0_7 = arith.constant 0 : index
    %12 = vector.load %arg3[%c0_6, %c0_7] : memref<256x128xf32, #tpu.memory_space<vmem>>, vector<256x128xf32>
    %cst_8 = arith.constant 2.500000e-01 : f32
    %13 = vector.broadcast %cst_8 : f32 to vector<256x128xf32>
    %14 = arith.cmpf olt, %12, %13 : vector<256x128xf32>
    %cst_9 = arith.constant 0.000000e+00 : f32
    %15 = vector.broadcast %cst_9 : f32 to vector<256x128xf32>
    %16 = arith.select %14, %9, %15 : vector<256x128xi1>, vector<256x128xf32>
    %17 = arith.truncf %16 : vector<256x128xf32> to vector<256x128xbf16>
    %cst_10 = arith.constant dense<0.000000e+00> : vector<256x128xf32>
    %18 = tpu.matmul %17, %3, %cst_10 {dimension_numbers = #tpu.dot_dimension_numbers<[1], [0], [0], [1], [0, 0, 1, 1], [], []>} : vector<256x128xbf16>, vector<128x128xbf16>, vector<256x128xf32> -> vector<256x128xf32>
    %cst_11 = arith.constant 4.000000e+00 : f32
    %19 = vector.broadcast %cst_11 : f32 to vector<256x1xf32>
    %20 = arith.divf %19, %11 : vector<256x1xf32>
    %21 = vector.broadcast %20 : vector<256x1xf32> to vector<256x128xf32>
    %22 = arith.mulf %18, %21 : vector<256x128xf32>
    %c0_12 = arith.constant 0 : index
    %c0_13 = arith.constant 0 : index
    %23 = vector.load %arg4[%c0_12, %c0_13] : memref<256x128xf32, #tpu.memory_space<vmem>>, vector<256x128xf32>
    tpu.vector_store %arg4[%c0_12, %c0_13], %22 {strides = array<i32>} : memref<256x128xf32, #tpu.memory_space<vmem>>, vector<256x128xf32>,
    return
  }
  func.func @transform_0(%arg0: i32) -> (i32, i32) {
    %c0_i32 = arith.constant 0 : i32
    %c0_i32_0 = arith.constant 0 : i32
    return %arg0, %c0_i32 : i32, i32
  }
  func.func @transform_1(%arg0: i32) -> (i32, i32) {
    %c0_i32 = arith.constant 0 : i32
    %c0_i32_0 = arith.constant 0 : i32
    %c0_i32_1 = arith.constant 0 : i32
    return %c0_i32, %c0_i32_0 : i32, i32
  }
  func.func @transform_2(%arg0: i32) -> (i32, i32) {
    %c0_i32 = arith.constant 0 : i32
    %c0_i32_0 = arith.constant 0 : i32
    return %arg0, %c0_i32 : i32, i32
  }
  func.func @transform_3(%arg0: i32) -> (i32, i32) {
    %c0_i32 = arith.constant 0 : i32
    %c0_i32_0 = arith.constant 0 : i32
    return %arg0, %c0_i32 : i32, i32
  }
}

</mosaic_0001>

<llo_original>
// kernel: tpu_custom_call.1
$region0: #{tpu_custom_call.1}
  #allocation0 [shape = 'u32[]', space=smem, size = 0x4, offset = 0x4, fixed_abs, tag = 'smem constant byte address 0x4 - core index']
  #allocation1 [shape = 'u32[144,128]{1,0:T(1,128)}', space=vmem, size = 0x12000, scoped, tag = 'internal scratch']
  %s0 = inlined_call_operand.hbm [shape: bf16[512,128], index: 0, kind: input, shape index: {}]
  %s1 = inlined_call_operand.hbm [shape: bf16[128,128], index: 1, kind: input, shape index: {}]
  %s2 = inlined_call_operand.hbm [shape: f32[512,128], index: 2, kind: input, shape index: {}]
  %s3 = inlined_call_operand.hbm [shape: f32[512,128], index: 3, kind: output, shape index: {}]
  %s4 = sld [smem:[#allocation0]]
  $region57: #{tpu_custom_call.1} parent=0
    _
  %s6 = ssub.s32 1, %s4
  %s7 = scalar_select 0, %s6, %s4
  $region1: #{tpu_custom_call.1} parent=0
    #allocation2 [shape = 'u8[131072]{0}', space=vmem, size = 0x20000, scoped, tag = 'input window, operand 0']
    #allocation3 [shape = 's32[2]{0}', space=sflag, size = 0x8, scoped, tag = 'scoped memory for tpu_custom_call.1']
    #allocation4 [shape = 's32[2]{0}', space=sflag, size = 0x8, scoped, tag = 'scoped memory for tpu_custom_call.1']
    #allocation5 [shape = 'u8[32768]{0}', space=vmem, size = 0x8000, scoped, tag = 'input window, operand 1, single buffered']
    #allocation6 [shape = 's32[1]{0}', space=sflag, size = 0x4, scoped, tag = 'scoped memory for tpu_custom_call.1']
    #allocation7 [shape = 'u8[262144]{0}', space=vmem, size = 0x40000, scoped, tag = 'input window, operand 2']
    #allocation8 [shape = 'u8[262144]{0}', space=vmem, size = 0x40000, scoped, tag = 'output window, operand 0']
    %8 = vsyncpa [#allocation3], 0
    %s9 = scalar_lea.sflag [#allocation3], 1
    %10 = vsyncpa %s9, 0
    %11 = vsyncpa [#allocation6], 0
    %12 = vsyncpa [#allocation4], 0
    %s13 = scalar_lea.sflag [#allocation4], 1
    %14 = vsyncpa %s13, 0
    loop: start=0, step=1, limit=4
    $region2: #{tpu_custom_call.1} parent=1 // loop_pre_header
      _
    $region3: #{tpu_custom_call.1} parent=1 // loop_header
      %s16 = sphi 0, %s20
      %p17 = scmp.ge.s32.totalorder %s16, 4
      %s26 = sphi 0, %s28
      %s29 = sphi 0, %s26
      %s30 = sphi 0, %s29
      %s46 = sphi 0, %s30
      %s50 = sphi 0, %s50
      %s52 = sphi 0, %s50
      %s53 = sphi 0, %s52
      %s67 = sphi 0, %s53
      %s73 = sphi 0, %s75
      %s76 = sphi 0, %s73
      %s77 = sphi 0, %s76
      %s93 = sphi 0, %s77
      %s99 = sphi 0, %s101
      %s102 = sphi 0, %s99
      %s103 = sphi 0, %s102
      %s119 = sphi 0, %s103
    $region4: #{tpu_custom_call.1} parent=1 // loop_header_branch
      %19 = sbr.rel (%p17) target = $region8
    $region5: #{tpu_custom_call.1} parent=1 // loop_body
      %s21 = ssub.s32 %s16, 1
      %s22 = ssub.s32 %s16, 2
      %s23 = sadd.s32 %s16, 1
      %s24 = ssub.s32 %s16, %s23
      %p25 = scmp.eq.s32.totalorder %s24, 0
      %s27 = sadd.s32 %s26, 1
      %s28 = scalar_select %p25, %s26, %s27
      %p31 = pneg %p25
      %p32 = scmp.eq.s32.totalorder %s16, 1
      %p33 = por %p31, %p32
      %p34 = scmp.ne.s32.totalorder %s26, %s29
      %p35 = scmp.eq.s32.totalorder %s16, 0
      %p36 = por %p34, %p35
      %p37 = scmp.ne.s32.totalorder %s26, %s29
      %p38 = scmp.eq.s32.totalorder %s21, 1
      %p39 = por %p37, %p38
      %p40 = scmp.ne.s32.totalorder %s29, %s30
      %p41 = scmp.eq.s32.totalorder %s21, 0
      %p42 = por %p40, %p41
      %p43 = scmp.ne.s32.totalorder %s29, %s30
      %p44 = scmp.eq.s32.totalorder %s22, 1
      %p45 = por %p43, %p44
      %p47 = scmp.ne.s32.totalorder %s30, %s46
      %p48 = scmp.eq.s32.totalorder %s22, 0
      %p49 = por %p47, %p48
      %s51 = sadd.s32 %s50, 1
      %p54 = scmp.eq.s32.totalorder %s16, 1
      %p55 = scmp.ne.s32.totalorder %s50, %s52
      %p56 = scmp.eq.s32.totalorder %s16, 0
      %p57 = por %p55, %p56
      %p58 = scmp.ne.s32.totalorder %s50, %s52
      %p59 = scmp.eq.s32.totalorder %s21, 1
      %p60 = por %p58, %p59
      %p61 = scmp.ne.s32.totalorder %s52, %s53
      %p62 = scmp.eq.s32.totalorder %s21, 0
      %p63 = por %p61, %p62
      %p64 = scmp.ne.s32.totalorder %s52, %s53
      %p65 = scmp.eq.s32.totalorder %s22, 1
      %p66 = por %p64, %p65
      %p68 = scmp.ne.s32.totalorder %s53, %s67
      %p69 = scmp.eq.s32.totalorder %s22, 0
      %p70 = por %p68, %p69
      %s71 = ssub.s32 %s16, %s23
      %p72 = scmp.eq.s32.totalorder %s71, 0
      %s74 = sadd.s32 %s73, 1
      %s75 = scalar_select %p72, %s73, %s74
      %p78 = pneg %p72
      %p79 = scmp.eq.s32.totalorder %s16, 1
      %p80 = por %p78, %p79
      %p81 = scmp.ne.s32.totalorder %s73, %s76
      %p82 = scmp.eq.s32.totalorder %s16, 0
      %p83 = por %p81, %p82
      %p84 = scmp.ne.s32.totalorder %s73, %s76
      %p85 = scmp.eq.s32.totalorder %s21, 1
      %p86 = por %p84, %p85
      %p87 = scmp.ne.s32.totalorder %s76, %s77
      %p88 = scmp.eq.s32.totalorder %s21, 0
      %p89 = por %p87, %p88
      %p90 = scmp.ne.s32.totalorder %s76, %s77
      %p91 = scmp.eq.s32.totalorder %s22, 1
      %p92 = por %p90, %p91
      %p94 = scmp.ne.s32.totalorder %s77, %s93
      %p95 = scmp.eq.s32.totalorder %s22, 0
      %p96 = por %p94, %p95
      %s97 = ssub.s32 %s16, %s23
      %p98 = scmp.eq.s32.totalorder %s97, 0
      %s100 = sadd.s32 %s99, 1
      %s101 = scalar_select %p98, %s99, %s100
      %p104 = pneg %p98
      %p105 = scmp.eq.s32.totalorder %s16, 1
      %p106 = por %p104, %p105
      %p107 = scmp.ne.s32.totalorder %s99, %s102
      %p108 = scmp.eq.s32.totalorder %s16, 0
      %p109 = por %p107, %p108
      %p110 = scmp.ne.s32.totalorder %s99, %s102
      %p111 = scmp.eq.s32.totalorder %s21, 1
      %p112 = por %p110, %p111
      %p113 = scmp.ne.s32.totalorder %s102, %s103
      %p114 = scmp.eq.s32.totalorder %s21, 0
      %p115 = por %p113, %p114
      %p116 = scmp.ne.s32.totalorder %s102, %s103
      %p117 = scmp.eq.s32.totalorder %s22, 1
      %p118 = por %p116, %p117
      %p120 = scmp.ne.s32.totalorder %s103, %s119
      %p121 = scmp.eq.s32.totalorder %s22, 0
      %p122 = por %p120, %p121
      %p123 = scmp.le.s32.totalorder 1, %s16
      %p124 = scmp.lt.s32.totalorder %s16, 3
      %p125 = pnand %p123, %p124
      %p126 = pneg %p125
      // Predicated region
      $region9: #{tpu_custom_call.1} parent=5 // pred_check
        _
      $region10: #{tpu_custom_call.1} parent=5 // pred_check_branch
        %128 = sbr.rel (%p125) target = $region12
      $region11: #{tpu_custom_call.1} parent=5 // pred_region
        %s129 = ssub.s32 %s16, 1
        // Predicated region
        $region13: #{tpu_custom_call.1} parent=11 // pred_check
          %p130 = pneg %p63
        $region14: #{tpu_custom_call.1} parent=11 // pred_check_branch
          %132 = sbr.rel (%p130) target = $region16
        $region15: #{tpu_custom_call.1} parent=11 // pred_region
          %s134 = ssub.s32 1024, 1024
          %135 = vsyncadd [#allocation6], %s134
          %s136 = sshll.u32 [#allocation5], 4
          %s137 = int_to_ptr.vmem [resolvable:$true] %s136
          %142 = dma.hbm_to_vmem [thread:$0]  %s1, 1024, %s137, [#allocation6], 64, 64, 4
        $region16: #{tpu_custom_call.1} parent=11 // pred_fallthru
          _
      $region12: #{tpu_custom_call.1} parent=5 // pred_fallthru
        _
      %p143 = scmp.lt.s32.totalorder %s16, 2
      // Predicated region
      $region17: #{tpu_custom_call.1} parent=5 // pred_check
        %p144 = pneg %p143
      $region18: #{tpu_custom_call.1} parent=5 // pred_check_branch
        %146 = sbr.rel (%p144) target = $region20
      $region19: #{tpu_custom_call.1} parent=5 // pred_region
        // Predicated region
        $region21: #{tpu_custom_call.1} parent=19 // pred_check
          %p147 = pneg %p36
        $region22: #{tpu_custom_call.1} parent=19 // pred_check_branch
          %149 = sbr.rel (%p147) target = $region24
        $region23: #{tpu_custom_call.1} parent=19 // pred_region
          %s150 = sand.u32 %s16, 1
          %s151 = scalar_lea.sflag [#allocation3], %s150
          %s152 = sand.u32 %s26, 1
          %s153 = smul.addr %s152, 128
          %s154 = scalar_lea.vmem [#allocation2], %s153
          %s155 = smul.u32 32, %s16
          %s157 = ssub.s32 2048, 2048
          %158 = vsyncadd %s151, %s157
          %s159 = smul.addr %s155, 64
          %s160 = scalar_lea.hbm %s0, %s159
          %s161 = sshll.u32 %s154, 4
          %s162 = int_to_ptr.vmem [resolvable:$true] %s161
          %167 = dma.hbm_to_vmem [thread:$0]  %s160, 2048, %s162, %s151, 64, 64, 4
        $region24: #{tpu_custom_call.1} parent=19 // pred_fallthru
          _
        // Predicated region
        $region25: #{tpu_custom_call.1} parent=19 // pred_check
          %p168 = pneg %p83
        $region26: #{tpu_custom_call.1} parent=19 // pred_check_branch
          %170 = sbr.rel (%p168) target = $region28
        $region27: #{tpu_custom_call.1} parent=19 // pred_region
          %s171 = sand.u32 %s16, 1
          %s172 = scalar_lea.sflag [#allocation3], %s171
          %s173 = sand.u32 %s73, 1
          %s174 = smul.addr %s173, 256
          %s175 = scalar_lea.vmem [#allocation7], %s174
          %s176 = smul.u32 32, %s16
          %s178 = ssub.s32 4096, 4096
          %179 = vsyncadd %s172, %s178
          %s180 = smul.addr %s176, 128
          %s181 = scalar_lea.hbm %s2, %s180
          %s182 = sshll.u32 %s175, 4
          %s183 = int_to_ptr.vmem [resolvable:$true] %s182
          %188 = dma.hbm_to_vmem [thread:$0]  %s181, 4096, %s183, %s172, 128, 128, 8
        $region28: #{tpu_custom_call.1} parent=19 // pred_fallthru
          _
      $region20: #{tpu_custom_call.1} parent=5 // pred_fallthru
        _
      %p189 = scmp.le.s32.totalorder 1, %s16
      %p190 = scmp.lt.s32.totalorder %s16, 3
      %p191 = pnand %p189, %p190
      %p192 = pneg %p191
      // Predicated region
      $region29: #{tpu_custom_call.1} parent=5 // pred_check
        _
      $region30: #{tpu_custom_call.1} parent=5 // pred_check_branch
        %194 = sbr.rel (%p191) target = $region32
      $region31: #{tpu_custom_call.1} parent=5 // pred_region
        %s195 = ssub.s32 %s16, 1
        %s196 = sand.u32 %s21, 1
        %s197 = scalar_lea.sflag [#allocation3], %s196
        %s198 = sand.u32 %s29, 1
        %s199 = smul.addr %s198, 128
        %s200 = scalar_lea.vmem [#allocation2], %s199
        // Predicated region
        $region33: #{tpu_custom_call.1} parent=31 // pred_check
          %p201 = pneg %p42
        $region34: #{tpu_custom_call.1} parent=31 // pred_check_branch
          %203 = sbr.rel (%p201) target = $region36
        $region35: #{tpu_custom_call.1} parent=31 // pred_region
          %204 = dma.done %s197, 2048
        $region36: #{tpu_custom_call.1} parent=31 // pred_fallthru
          _
        // Predicated region
        $region37: #{tpu_custom_call.1} parent=31 // pred_check
          %p205 = pneg %p63
        $region38: #{tpu_custom_call.1} parent=31 // pred_check_branch
          %207 = sbr.rel (%p205) target = $region40
        $region39: #{tpu_custom_call.1} parent=31 // pred_region
          %208 = dma.done [#allocation6], 1024
        $region40: #{tpu_custom_call.1} parent=31 // pred_fallthru
          _
        %s209 = sand.u32 %s21, 1
        %s210 = scalar_lea.sflag [#allocation3], %s209
        %s211 = sand.u32 %s76, 1
        %s212 = smul.addr %s211, 256
        %s213 = scalar_lea.vmem [#allocation7], %s212
        // Predicated region
        $region41: #{tpu_custom_call.1} parent=31 // pred_check
          %p214 = pneg %p89
        $region42: #{tpu_custom_call.1} parent=31 // pred_check_branch
          %216 = sbr.rel (%p214) target = $region44
        $region43: #{tpu_custom_call.1} parent=31 // pred_region
          %217 = dma.done %s210, 4096
        $region44: #{tpu_custom_call.1} parent=31 // pred_fallthru
          _
        %s218 = sand.u32 %s21, 1
        %s219 = scalar_lea.sflag [#allocation3], %s218
        %s220 = sand.u32 %s29, 1
        %s221 = smul.addr %s220, 128
        %s222 = scalar_lea.vmem [#allocation2], %s221
        %p223 = pneg %p42
        %p224 = pneg %p39
        %p225 = pneg %p63
        %p226 = pneg %p60
        %s227 = sand.u32 %s21, 1
        %s228 = scalar_lea.sflag [#allocation3], %s227
        %s229 = sand.u32 %s76, 1
        %s230 = smul.addr %s229, 256
        %s231 = scalar_lea.vmem [#allocation7], %s230
        %p232 = pneg %p89
        %p233 = pneg %p86
        %p234 = pneg %p115
        %p235 = pneg %p112
        %s236 = sand.u32 %s102, 1
        %s237 = scalar_lea.sflag [#allocation4], %s236
        %s238 = sand.u32 %s102, 1
        %s239 = smul.addr %s238, 256
        %s240 = scalar_lea.vmem [#allocation8], %s239
        %s241 = smul.u32 32, %s21
        %s242 = smul.u32 32, %s21
        %s243 = smul.u32 32, %s21
        %v246 = vld [vmem:[%s200] sm:$0xf]
        %v247 = vld [vmem:[%s200 + $0x4] sm:$0xf]
        %v248 = vld [vmem:[%s200 + $0x8] sm:$0xf]
        %v249 = vld [vmem:[%s200 + $0xc] sm:$0xf]
        %v250 = vld [vmem:[%s200 + $0x10] sm:$0xf]
        %v251 = vld [vmem:[%s200 + $0x14] sm:$0xf]
        %v252 = vld [vmem:[%s200 + $0x18] sm:$0xf]
        %v253 = vld [vmem:[%s200 + $0x1c] sm:$0xf]
        %v254 = vld [vmem:[%s200 + $0x20] sm:$0xf]
        %v255 = vld [vmem:[%s200 + $0x24] sm:$0xf]
        %v256 = vld [vmem:[%s200 + $0x28] sm:$0xf]
        %v257 = vld [vmem:[%s200 + $0x2c] sm:$0xf]
        %v258 = vld [vmem:[%s200 + $0x30] sm:$0xf]
        %v259 = vld [vmem:[%s200 + $0x34] sm:$0xf]
        %v260 = vld [vmem:[%s200 + $0x38] sm:$0xf]
        %v261 = vld [vmem:[%s200 + $0x3c] sm:$0xf]
        %v262 = vld [vmem:[%s200 + $0x40] sm:$0xf]
        %v263 = vld [vmem:[%s200 + $0x44] sm:$0xf]
        %v264 = vld [vmem:[%s200 + $0x48] sm:$0xf]
        %v265 = vld [vmem:[%s200 + $0x4c] sm:$0xf]
        %v266 = vld [vmem:[%s200 + $0x50] sm:$0xf]
        %v267 = vld [vmem:[%s200 + $0x54] sm:$0xf]
        %v268 = vld [vmem:[%s200 + $0x58] sm:$0xf]
        %v269 = vld [vmem:[%s200 + $0x5c] sm:$0xf]
        %v270 = vld [vmem:[%s200 + $0x60] sm:$0xf]
        %v271 = vld [vmem:[%s200 + $0x64] sm:$0xf]
        %v272 = vld [vmem:[%s200 + $0x68] sm:$0xf]
        %v273 = vld [vmem:[%s200 + $0x6c] sm:$0xf]
        %v274 = vld [vmem:[%s200 + $0x70] sm:$0xf]
        %v275 = vld [vmem:[%s200 + $0x74] sm:$0xf]
        %v276 = vld [vmem:[%s200 + $0x78] sm:$0xf]
        %v277 = vld [vmem:[%s200 + $0x7c] sm:$0xf]
        %v278 = vmul.bf16 %v246, 1056980736
        %v279 = vmul.bf16 %v247, 1056980736
        %v280 = vmul.bf16 %v248, 1056980736
        %v281 = vmul.bf16 %v249, 1056980736
        %v282 = vmul.bf16 %v250, 1056980736
        %v283 = vmul.bf16 %v251, 1056980736
        %v284 = vmul.bf16 %v252, 1056980736
        %v285 = vmul.bf16 %v253, 1056980736
        %v286 = vmul.bf16 %v254, 1056980736
        %v287 = vmul.bf16 %v255, 1056980736
        %v288 = vmul.bf16 %v256, 1056980736
        %v289 = vmul.bf16 %v257, 1056980736
        %v290 = vmul.bf16 %v258, 1056980736
        %v291 = vmul.bf16 %v259, 1056980736
        %v292 = vmul.bf16 %v260, 1056980736
        %v293 = vmul.bf16 %v261, 1056980736
        %v294 = vmul.bf16 %v262, 1056980736
        %v295 = vmul.bf16 %v263, 1056980736
        %v296 = vmul.bf16 %v264, 1056980736
        %v297 = vmul.bf16 %v265, 1056980736
        %v298 = vmul.bf16 %v266, 1056980736
        %v299 = vmul.bf16 %v267, 1056980736
        %v300 = vmul.bf16 %v268, 1056980736
        %v301 = vmul.bf16 %v269, 1056980736
        %v302 = vmul.bf16 %v270, 1056980736
        %v303 = vmul.bf16 %v271, 1056980736
        %v304 = vmul.bf16 %v272, 1056980736
        %v305 = vmul.bf16 %v273, 1056980736
        %v306 = vmul.bf16 %v274, 1056980736
        %v307 = vmul.bf16 %v275, 1056980736
        %v308 = vmul.bf16 %v276, 1056980736
        %v309 = vmul.bf16 %v277, 1056980736
        %v310 = vld [vmem:[#allocation5] sm:$0xf]
        %v311 = vld [vmem:[#allocation5 + $0x4] sm:$0xf]
        %v312 = vld [vmem:[#allocation5 + $0x8] sm:$0xf]
        %v313 = vld [vmem:[#allocation5 + $0xc] sm:$0xf]
        %v314 = vld [vmem:[#allocation5 + $0x10] sm:$0xf]
        %v315 = vld [vmem:[#allocation5 + $0x14] sm:$0xf]
        %v316 = vld [vmem:[#allocation5 + $0x18] sm:$0xf]
        %v317 = vld [vmem:[#allocation5 + $0x1c] sm:$0xf]
        %v318 = vld [vmem:[#allocation5 + $0x20] sm:$0xf]
        %v319 = vld [vmem:[#allocation5 + $0x24] sm:$0xf]
        %v320 = vld [vmem:[#allocation5 + $0x28] sm:$0xf]
        %v321 = vld [vmem:[#allocation5 + $0x2c] sm:$0xf]
        %v322 = vld [vmem:[#allocation5 + $0x30] sm:$0xf]
        %v323 = vld [vmem:[#allocation5 + $0x34] sm:$0xf]
        %v324 = vld [vmem:[#allocation5 + $0x38] sm:$0xf]
        %v325 = vld [vmem:[#allocation5 + $0x3c] sm:$0xf]
        %v358 = vunpack.c.l.b16 %v278
        %v359 = vunpack.c.l.b16 %v279
        %v360 = vunpack.c.l.b16 %v280
        %v361 = vunpack.c.l.b16 %v281
        %v362 = vunpack.c.l.b16 %v282
        %v363 = vunpack.c.l.b16 %v283
        %v364 = vunpack.c.l.b16 %v284
        %v365 = vunpack.c.l.b16 %v285
        %v366 = vunpack.c.l.b16 %v286
        %v367 = vunpack.c.l.b16 %v287
        %v368 = vunpack.c.l.b16 %v288
        %v369 = vunpack.c.l.b16 %v289
        %v370 = vunpack.c.l.b16 %v290
        %v371 = vunpack.c.l.b16 %v291
        %v372 = vunpack.c.l.b16 %v292
        %v373 = vunpack.c.l.b16 %v293
        %v374 = vunpack.c.l.b16 %v294
        %v375 = vunpack.c.l.b16 %v295
        %v376 = vunpack.c.l.b16 %v296
        %v377 = vunpack.c.l.b16 %v297
        %v378 = vunpack.c.l.b16 %v298
        %v379 = vunpack.c.l.b16 %v299
        %v380 = vunpack.c.l.b16 %v300
        %v381 = vunpack.c.l.b16 %v301
        %v382 = vunpack.c.l.b16 %v302
        %v383 = vunpack.c.l.b16 %v303
        %v384 = vunpack.c.l.b16 %v304
        %v385 = vunpack.c.l.b16 %v305
        %v386 = vunpack.c.l.b16 %v306
        %v387 = vunpack.c.l.b16 %v307
        %v388 = vunpack.c.l.b16 %v308
        %v389 = vunpack.c.l.b16 %v309
        %v390 = vpack.c.b16 %v359, %v358
        %v391 = vpack.c.b16 %v361, %v360
        %v392 = vpack.c.b16 %v363, %v362
        %v393 = vpack.c.b16 %v365, %v364
        %v394 = vpack.c.b16 %v367, %v366
        %v395 = vpack.c.b16 %v369, %v368
        %v396 = vpack.c.b16 %v371, %v370
        %v397 = vpack.c.b16 %v373, %v372
        %v398 = vpack.c.b16 %v375, %v374
        %v399 = vpack.c.b16 %v377, %v376
        %v400 = vpack.c.b16 %v379, %v378
        %v401 = vpack.c.b16 %v381, %v380
        %v402 = vpack.c.b16 %v383, %v382
        %v403 = vpack.c.b16 %v385, %v384
        %v404 = vpack.c.b16 %v387, %v386
        %v405 = vpack.c.b16 %v389, %v388
        %v438 = vunpack.c.l.b16 %v310
        %v439 = vunpack.c.l.b16 %v311
        %v440 = vunpack.c.l.b16 %v312
        %v441 = vunpack.c.l.b16 %v313
        %v442 = vunpack.c.l.b16 %v314
        %v443 = vunpack.c.l.b16 %v315
        %v444 = vunpack.c.l.b16 %v316
        %v445 = vunpack.c.l.b16 %v317
        %v446 = vunpack.c.l.b16 %v318
        %v447 = vunpack.c.l.b16 %v319
        %v448 = vunpack.c.l.b16 %v320
        %v449 = vunpack.c.l.b16 %v321
        %v450 = vunpack.c.l.b16 %v322
        %v451 = vunpack.c.l.b16 %v323
        %v452 = vunpack.c.l.b16 %v324
        %v453 = vunpack.c.l.b16 %v325
        %v454 = vpack.c.b16 %v439, %v438
        %v455 = vpack.c.b16 %v441, %v440
        %v456 = vpack.c.b16 %v443, %v442
        %v457 = vpack.c.b16 %v445, %v444
        %v458 = vpack.c.b16 %v447, %v446
        %v459 = vpack.c.b16 %v449, %v448
        %v460 = vpack.c.b16 %v451, %v450
        %v461 = vpack.c.b16 %v453, %v452
        %470 = vmatprep.subr.bf16.mxu0 0
        %471 = vmatpush1.bf16.xpose.msra.mxu0 %v461
        %472 = vmatprep.subr.bf16.mxu0 0
        %473 = vmatpush1.bf16.xpose.msra.mxu0 %v460
        %474 = vmatprep.subr.bf16.mxu0 0
        %475 = vmatpush1.bf16.xpose.msra.mxu0 %v459
        %476 = vmatprep.subr.bf16.mxu0 0
        %477 = vmatpush1.bf16.xpose.msra.mxu0 %v458
        %478 = vmatprep.subr.bf16.mxu0 0
        %479 = vmatpush1.bf16.xpose.msra.mxu0 %v457
        %480 = vmatprep.subr.bf16.mxu0 0
        %481 = vmatpush1.bf16.xpose.msra.mxu0 %v456
        %482 = vmatprep.subr.bf16.mxu0 0
        %483 = vmatpush1.bf16.xpose.msra.mxu0 %v455
        %484 = vmatprep.subr.bf16.mxu0 0
        %485 = vmatpush1.bf16.xpose.msra.mxu0 %v454
        %486 = vmatprep.subr.bf16.mxu0 0
        %487 = vmatpush2.bf16.xpose.msra.mxu0 0
        %488 = vmatprep.subr.bf16.mxu0 0
        %489 = vmatpush2.bf16.xpose.msra.mxu0 0
        %490 = vmatprep.subr.bf16.mxu0 0
        %491 = vmatpush2.bf16.xpose.msra.mxu0 0
        %492 = vmatprep.subr.bf16.mxu0 0
        %493 = vmatpush2.bf16.xpose.msra.mxu0 0
        %494 = vmatprep.subr.bf16.mxu0 0
        %495 = vmatpush2.bf16.xpose.msra.mxu0 0
        %496 = vmatprep.subr.bf16.mxu0 0
        %497 = vmatpush2.bf16.xpose.msra.mxu0 0
        %498 = vmatprep.subr.bf16.mxu0 0
        %499 = vmatpush2.bf16.xpose.msra.mxu0 0
        %500 = vmatprep.subr.bf16.mxu0 0
        %501 = vmatpush2.bf16.xpose.msra.mxu0 0
        %502 = vmatprep.mubr.bf16.mxu0 0
        %503 = vmatmul.mubr.bf16.gmra.mxu0 %v390
        %v504 = vpop.f32.mrf.mxu0
        %v505 = vadd.f32 0.0, %v504
        %v506 = vpop.f32.mrf.mxu0
        %v507 = vpop.f32.mrf.mxu0
        %v508 = vadd.f32 0.0, %v507
        %v509 = vpop.f32.mrf.mxu0
        %510 = vmatprep.mubr.bf16.mxu0 0
        %511 = vmatmul.mubr.bf16.gmra.mxu0 %v391
        %v512 = vpop.f32.mrf.mxu0
        %v513 = vadd.f32 0.0, %v512
        %v514 = vpop.f32.mrf.mxu0
        %v515 = vpop.f32.mrf.mxu0
        %v516 = vadd.f32 0.0, %v515
        %v517 = vpop.f32.mrf.mxu0
        %518 = vmatprep.mubr.bf16.mxu0 0
        %519 = vmatmul.mubr.bf16.gmra.mxu0 %v392
        %v520 = vpop.f32.mrf.mxu0
        %v521 = vadd.f32 0.0, %v520
        %v522 = vpop.f32.mrf.mxu0
        %v523 = vpop.f32.mrf.mxu0
        %v524 = vadd.f32 0.0, %v523
        %v525 = vpop.f32.mrf.mxu0
        %526 = vmatprep.mubr.bf16.mxu0 0
        %527 = vmatmul.mubr.bf16.gmra.mxu0 %v393
        %v528 = vpop.f32.mrf.mxu0
        %v529 = vadd.f32 0.0, %v528
        %v530 = vpop.f32.mrf.mxu0
        %v531 = vpop.f32.mrf.mxu0
        %v532 = vadd.f32 0.0, %v531
        %v533 = vpop.f32.mrf.mxu0
        %534 = vmatprep.mubr.bf16.mxu0 0
        %535 = vmatmul.mubr.bf16.gmra.mxu0 %v394
        %v536 = vpop.f32.mrf.mxu0
        %v537 = vadd.f32 0.0, %v536
        %v538 = vpop.f32.mrf.mxu0
        %v539 = vpop.f32.mrf.mxu0
        %v540 = vadd.f32 0.0, %v539
        %v541 = vpop.f32.mrf.mxu0
        %542 = vmatprep.mubr.bf16.mxu0 0
        %543 = vmatmul.mubr.bf16.gmra.mxu0 %v395
        %v544 = vpop.f32.mrf.mxu0
        %v545 = vadd.f32 0.0, %v544
        %v546 = vpop.f32.mrf.mxu0
        %v547 = vpop.f32.mrf.mxu0
        %v548 = vadd.f32 0.0, %v547
        %v549 = vpop.f32.mrf.mxu0
        %550 = vmatprep.mubr.bf16.mxu0 0
        %551 = vmatmul.mubr.bf16.gmra.mxu0 %v396
        %v552 = vpop.f32.mrf.mxu0
        %v553 = vadd.f32 0.0, %v552
        %v554 = vpop.f32.mrf.mxu0
        %v555 = vpop.f32.mrf.mxu0
        %v556 = vadd.f32 0.0, %v555
        %v557 = vpop.f32.mrf.mxu0
        %558 = vmatprep.mubr.bf16.mxu0 0
        %559 = vmatmul.mubr.bf16.gmra.mxu0 %v397
        %v560 = vpop.f32.mrf.mxu0
        %v561 = vadd.f32 0.0, %v560
        %v562 = vpop.f32.mrf.mxu0
        %v563 = vpop.f32.mrf.mxu0
        %v564 = vadd.f32 0.0, %v563
        %v565 = vpop.f32.mrf.mxu0
        %566 = vmatprep.mubr.bf16.mxu0 0
        %567 = vmatmul.mubr.bf16.gmra.mxu0 %v398
        %v568 = vpop.f32.mrf.mxu0
        %v569 = vadd.f32 0.0, %v568
        %v570 = vpop.f32.mrf.mxu0
        %v571 = vpop.f32.mrf.mxu0
        %v572 = vadd.f32 0.0, %v571
        %v573 = vpop.f32.mrf.mxu0
        %574 = vmatprep.mubr.bf16.mxu0 0
        %575 = vmatmul.mubr.bf16.gmra.mxu0 %v399
        %v576 = vpop.f32.mrf.mxu0
        %v577 = vadd.f32 0.0, %v576
        %v578 = vpop.f32.mrf.mxu0
        %v579 = vpop.f32.mrf.mxu0
        %v580 = vadd.f32 0.0, %v579
        %v581 = vpop.f32.mrf.mxu0
        %582 = vmatprep.mubr.bf16.mxu0 0
        %583 = vmatmul.mubr.bf16.gmra.mxu0 %v400
        %v584 = vpop.f32.mrf.mxu0
        %v585 = vadd.f32 0.0, %v584
        %v586 = vpop.f32.mrf.mxu0
        %v587 = vpop.f32.mrf.mxu0
        %v588 = vadd.f32 0.0, %v587
        %v589 = vpop.f32.mrf.mxu0
        %590 = vmatprep.mubr.bf16.mxu0 0
        %591 = vmatmul.mubr.bf16.gmra.mxu0 %v401
        %v592 = vpop.f32.mrf.mxu0
        %v593 = vadd.f32 0.0, %v592
        %v594 = vpop.f32.mrf.mxu0
        %v595 = vpop.f32.mrf.mxu0
        %v596 = vadd.f32 0.0, %v595
        %v597 = vpop.f32.mrf.mxu0
        %598 = vmatprep.mubr.bf16.mxu0 0
        %599 = vmatmul.mubr.bf16.gmra.mxu0 %v402
        %v600 = vpop.f32.mrf.mxu0
        %v601 = vadd.f32 0.0, %v600
        %v602 = vpop.f32.mrf.mxu0
        %v603 = vpop.f32.mrf.mxu0
        %v604 = vadd.f32 0.0, %v603
        %v605 = vpop.f32.mrf.mxu0
        %606 = vmatprep.mubr.bf16.mxu0 0
        %607 = vmatmul.mubr.bf16.gmra.mxu0 %v403
        %v608 = vpop.f32.mrf.mxu0
        %v609 = vadd.f32 0.0, %v608
        %v610 = vpop.f32.mrf.mxu0
        %v611 = vpop.f32.mrf.mxu0
        %v612 = vadd.f32 0.0, %v611
        %v613 = vpop.f32.mrf.mxu0
        %614 = vmatprep.mubr.bf16.mxu0 0
        %615 = vmatmul.mubr.bf16.gmra.mxu0 %v404
        %v616 = vpop.f32.mrf.mxu0
        %v617 = vadd.f32 0.0, %v616
        %v618 = vpop.f32.mrf.mxu0
        %v619 = vpop.f32.mrf.mxu0
        %v620 = vadd.f32 0.0, %v619
        %v621 = vpop.f32.mrf.mxu0
        %622 = vmatprep.mubr.bf16.mxu0 0
        %623 = vmatmul.mubr.bf16.gmra.mxu0 %v405
        %v624 = vpop.f32.mrf.mxu0
        %v625 = vadd.f32 0.0, %v624
        %v626 = vpop.f32.mrf.mxu0
        %v627 = vpop.f32.mrf.mxu0
        %v628 = vadd.f32 0.0, %v627
        %v629 = vpop.f32.mrf.mxu0
        %630 = vdwg.mxu0
        %631 = vmax.xlane.f32.xlu0 %v505
        %v632 = vpop.xlane.xlu0 %631
        %633 = vmax.xlane.f32.xlu0 %v508
        %v634 = vpop.xlane.xlu0 %633
        %635 = vmax.xlane.f32.xlu0 %v513
        %v636 = vpop.xlane.xlu0 %635
        %637 = vmax.xlane.f32.xlu0 %v516
        %v638 = vpop.xlane.xlu0 %637
        %639 = vmax.xlane.f32.xlu0 %v521
        %v640 = vpop.xlane.xlu0 %639
        %641 = vmax.xlane.f32.xlu0 %v524
        %v642 = vpop.xlane.xlu0 %641
        %643 = vmax.xlane.f32.xlu0 %v529
        %v644 = vpop.xlane.xlu0 %643
        %645 = vmax.xlane.f32.xlu0 %v532
        %v646 = vpop.xlane.xlu0 %645
        %647 = vmax.xlane.f32.xlu0 %v537
        %v648 = vpop.xlane.xlu0 %647
        %649 = vmax.xlane.f32.xlu0 %v540
        %v650 = vpop.xlane.xlu0 %649
        %651 = vmax.xlane.f32.xlu0 %v545
        %v652 = vpop.xlane.xlu0 %651
        %653 = vmax.xlane.f32.xlu0 %v548
        %v654 = vpop.xlane.xlu0 %653
        %655 = vmax.xlane.f32.xlu0 %v553
        %v656 = vpop.xlane.xlu0 %655
        %657 = vmax.xlane.f32.xlu0 %v556
        %v658 = vpop.xlane.xlu0 %657
        %659 = vmax.xlane.f32.xlu0 %v561
        %v660 = vpop.xlane.xlu0 %659
        %661 = vmax.xlane.f32.xlu0 %v564
        %v662 = vpop.xlane.xlu0 %661
        %663 = vmax.xlane.f32.xlu0 %v569
        %v664 = vpop.xlane.xlu0 %663
        %665 = vmax.xlane.f32.xlu0 %v572
        %v666 = vpop.xlane.xlu0 %665
        %667 = vmax.xlane.f32.xlu0 %v577
        %v668 = vpop.xlane.xlu0 %667
        %669 = vmax.xlane.f32.xlu0 %v580
        %v670 = vpop.xlane.xlu0 %669
        %671 = vmax.xlane.f32.xlu0 %v585
        %v672 = vpop.xlane.xlu0 %671
        %673 = vmax.xlane.f32.xlu0 %v588
        %v674 = vpop.xlane.xlu0 %673
        %675 = vmax.xlane.f32.xlu0 %v593
        %v676 = vpop.xlane.xlu0 %675
        %677 = vmax.xlane.f32.xlu0 %v596
        %v678 = vpop.xlane.xlu0 %677
        %679 = vmax.xlane.f32.xlu0 %v601
        %v680 = vpop.xlane.xlu0 %679
        %681 = vmax.xlane.f32.xlu0 %v604
        %v682 = vpop.xlane.xlu0 %681
        %683 = vmax.xlane.f32.xlu0 %v609
        %v684 = vpop.xlane.xlu0 %683
        %685 = vmax.xlane.f32.xlu0 %v612
        %v686 = vpop.xlane.xlu0 %685
        %687 = vmax.xlane.f32.xlu0 %v617
        %v688 = vpop.xlane.xlu0 %687
        %689 = vmax.xlane.f32.xlu0 %v620
        %v690 = vpop.xlane.xlu0 %689
        %691 = vmax.xlane.f32.xlu0 %v625
        %v692 = vpop.xlane.xlu0 %691
        %693 = vmax.xlane.f32.xlu0 %v628
        %v694 = vpop.xlane.xlu0 %693
        %v695 = vsub.f32 %v505, %v632
        %v696 = vsub.f32 %v508, %v634
        %v697 = vsub.f32 %v513, %v636
        %v698 = vsub.f32 %v516, %v638
        %v699 = vsub.f32 %v521, %v640
        %v700 = vsub.f32 %v524, %v642
        %v701 = vsub.f32 %v529, %v644
        %v702 = vsub.f32 %v532, %v646
        %v703 = vsub.f32 %v537, %v648
        %v704 = vsub.f32 %v540, %v650
        %v705 = vsub.f32 %v545, %v652
        %v706 = vsub.f32 %v548, %v654
        %v707 = vsub.f32 %v553, %v656
        %v708 = vsub.f32 %v556, %v658
        %v709 = vsub.f32 %v561, %v660
        %v710 = vsub.f32 %v564, %v662
        %v711 = vsub.f32 %v569, %v664
        %v712 = vsub.f32 %v572, %v666
        %v713 = vsub.f32 %v577, %v668
        %v714 = vsub.f32 %v580, %v670
        %v715 = vsub.f32 %v585, %v672
        %v716 = vsub.f32 %v588, %v674
        %v717 = vsub.f32 %v593, %v676
        %v718 = vsub.f32 %v596, %v678
        %v719 = vsub.f32 %v601, %v680
        %v720 = vsub.f32 %v604, %v682
        %v721 = vsub.f32 %v609, %v684
        %v722 = vsub.f32 %v612, %v686
        %v723 = vsub.f32 %v617, %v688
        %v724 = vsub.f32 %v620, %v690
        %v725 = vsub.f32 %v625, %v692
        %v726 = vsub.f32 %v628, %v694
        %v727 = vmul.f32 %v695, 1.442695
        %v728 = vpow.pop %v727
        %v729 = vmul.f32 %v696, 1.442695
        %v730 = vpow.pop %v729
        %v731 = vmul.f32 %v697, 1.442695
        %v732 = vpow.pop %v731
        %v733 = vmul.f32 %v698, 1.442695
        %v734 = vpow.pop %v733
        %v735 = vmul.f32 %v699, 1.442695
        %v736 = vpow.pop %v735
        %v737 = vmul.f32 %v700, 1.442695
        %v738 = vpow.pop %v737
        %v739 = vmul.f32 %v701, 1.442695
        %v740 = vpow.pop %v739
        %v741 = vmul.f32 %v702, 1.442695
        %v742 = vpow.pop %v741
        %v743 = vmul.f32 %v703, 1.442695
        %v744 = vpow.pop %v743
        %v745 = vmul.f32 %v704, 1.442695
        %v746 = vpow.pop %v745
        %v747 = vmul.f32 %v705, 1.442695
        %v748 = vpow.pop %v747
        %v749 = vmul.f32 %v706, 1.442695
        %v750 = vpow.pop %v749
        %v751 = vmul.f32 %v707, 1.442695
        %v752 = vpow.pop %v751
        %v753 = vmul.f32 %v708, 1.442695
        %v754 = vpow.pop %v753
        %v755 = vmul.f32 %v709, 1.442695
        %v756 = vpow.pop %v755
        %v757 = vmul.f32 %v710, 1.442695
        %v758 = vpow.pop %v757
        %v759 = vmul.f32 %v711, 1.442695
        %v760 = vpow.pop %v759
        %v761 = vmul.f32 %v712, 1.442695
        %v762 = vpow.pop %v761
        %v763 = vmul.f32 %v713, 1.442695
        %v764 = vpow.pop %v763
        %v765 = vmul.f32 %v714, 1.442695
        %v766 = vpow.pop %v765
        %v767 = vmul.f32 %v715, 1.442695
        %v768 = vpow.pop %v767
        %v769 = vmul.f32 %v716, 1.442695
        %v770 = vpow.pop %v769
        %v771 = vmul.f32 %v717, 1.442695
        %v772 = vpow.pop %v771
        %v773 = vmul.f32 %v718, 1.442695
        %v774 = vpow.pop %v773
        %v775 = vmul.f32 %v719, 1.442695
        %v776 = vpow.pop %v775
        %v777 = vmul.f32 %v720, 1.442695
        %v778 = vpow.pop %v777
        %v779 = vmul.f32 %v721, 1.442695
        %v780 = vpow.pop %v779
        %v781 = vmul.f32 %v722, 1.442695
        %v782 = vpow.pop %v781
        %v783 = vmul.f32 %v723, 1.442695
        %v784 = vpow.pop %v783
        %v785 = vmul.f32 %v724, 1.442695
        %v786 = vpow.pop %v785
        %v787 = vmul.f32 %v725, 1.442695
        %v788 = vpow.pop %v787
        %v789 = vmul.f32 %v726, 1.442695
        %v790 = vpow.pop %v789
        %791 = vadd.xlane.f32.xlu0 %v728
        %v792 = vpop.xlane.xlu0 %791
        %793 = vadd.xlane.f32.xlu0 %v730
        %v794 = vpop.xlane.xlu0 %793
        %795 = vadd.xlane.f32.xlu0 %v732
        %v796 = vpop.xlane.xlu0 %795
        %797 = vadd.xlane.f32.xlu0 %v734
        %v798 = vpop.xlane.xlu0 %797
        %799 = vadd.xlane.f32.xlu0 %v736
        %v800 = vpop.xlane.xlu0 %799
        %801 = vadd.xlane.f32.xlu0 %v738
        %v802 = vpop.xlane.xlu0 %801
        %803 = vadd.xlane.f32.xlu0 %v740
        %v804 = vpop.xlane.xlu0 %803
        %805 = vadd.xlane.f32.xlu0 %v742
        %v806 = vpop.xlane.xlu0 %805
        %807 = vadd.xlane.f32.xlu0 %v744
        %v808 = vpop.xlane.xlu0 %807
        %809 = vadd.xlane.f32.xlu0 %v746
        %v810 = vpop.xlane.xlu0 %809
        %811 = vadd.xlane.f32.xlu0 %v748
        %v812 = vpop.xlane.xlu0 %811
        %813 = vadd.xlane.f32.xlu0 %v750
        %v814 = vpop.xlane.xlu0 %813
        %815 = vadd.xlane.f32.xlu0 %v752
        %v816 = vpop.xlane.xlu0 %815
        %817 = vadd.xlane.f32.xlu0 %v754
        %v818 = vpop.xlane.xlu0 %817
        %819 = vadd.xlane.f32.xlu0 %v756
        %v820 = vpop.xlane.xlu0 %819
        %821 = vadd.xlane.f32.xlu0 %v758
        %v822 = vpop.xlane.xlu0 %821
        %823 = vadd.xlane.f32.xlu0 %v760
        %v824 = vpop.xlane.xlu0 %823
        %825 = vadd.xlane.f32.xlu0 %v762
        %v826 = vpop.xlane.xlu0 %825
        %827 = vadd.xlane.f32.xlu0 %v764
        %v828 = vpop.xlane.xlu0 %827
        %829 = vadd.xlane.f32.xlu0 %v766
        %v830 = vpop.xlane.xlu0 %829
        %831 = vadd.xlane.f32.xlu0 %v768
        %v832 = vpop.xlane.xlu0 %831
        %833 = vadd.xlane.f32.xlu0 %v770
        %v834 = vpop.xlane.xlu0 %833
        %835 = vadd.xlane.f32.xlu0 %v772
        %v836 = vpop.xlane.xlu0 %835
        %837 = vadd.xlane.f32.xlu0 %v774
        %v838 = vpop.xlane.xlu0 %837
        %839 = vadd.xlane.f32.xlu0 %v776
        %v840 = vpop.xlane.xlu0 %839
        %841 = vadd.xlane.f32.xlu0 %v778
        %v842 = vpop.xlane.xlu0 %841
        %843 = vadd.xlane.f32.xlu0 %v780
        %v844 = vpop.xlane.xlu0 %843
        %845 = vadd.xlane.f32.xlu0 %v782
        %v846 = vpop.xlane.xlu0 %845
        %847 = vadd.xlane.f32.xlu0 %v784
        %v848 = vpop.xlane.xlu0 %847
        %849 = vadd.xlane.f32.xlu0 %v786
        %v850 = vpop.xlane.xlu0 %849
        %851 = vadd.xlane.f32.xlu0 %v788
        %v852 = vpop.xlane.xlu0 %851
        %853 = vadd.xlane.f32.xlu0 %v790
        %v854 = vpop.xlane.xlu0 %853
        %v855 = vld [vmem:[%s213] sm:$0xff]
        %v856 = vld [vmem:[%s213 + $0x8] sm:$0xff]
        %v857 = vld [vmem:[%s213 + $0x10] sm:$0xff]
        %v858 = vld [vmem:[%s213 + $0x18] sm:$0xff]
        %v859 = vld [vmem:[%s213 + $0x20] sm:$0xff]
        %v860 = vld [vmem:[%s213 + $0x28] sm:$0xff]
        %v861 = vld [vmem:[%s213 + $0x30] sm:$0xff]
        %v862 = vld [vmem:[%s213 + $0x38] sm:$0xff]
        %v863 = vld [vmem:[%s213 + $0x40] sm:$0xff]
        %v864 = vld [vmem:[%s213 + $0x48] sm:$0xff]
        %v865 = vld [vmem:[%s213 + $0x50] sm:$0xff]
        %v866 = vld [vmem:[%s213 + $0x58] sm:$0xff]
        %v867 = vld [vmem:[%s213 + $0x60] sm:$0xff]
        %v868 = vld [vmem:[%s213 + $0x68] sm:$0xff]
        %v869 = vld [vmem:[%s213 + $0x70] sm:$0xff]
        %v870 = vld [vmem:[%s213 + $0x78] sm:$0xff]
        %v871 = vld [vmem:[%s213 + $0x80] sm:$0xff]
        %v872 = vld [vmem:[%s213 + $0x88] sm:$0xff]
        %v873 = vld [vmem:[%s213 + $0x90] sm:$0xff]
        %v874 = vld [vmem:[%s213 + $0x98] sm:$0xff]
        %v875 = vld [vmem:[%s213 + $0xa0] sm:$0xff]
        %v876 = vld [vmem:[%s213 + $0xa8] sm:$0xff]
        %v877 = vld [vmem:[%s213 + $0xb0] sm:$0xff]
        %v878 = vld [vmem:[%s213 + $0xb8] sm:$0xff]
        %v879 = vld [vmem:[%s213 + $0xc0] sm:$0xff]
        %v880 = vld [vmem:[%s213 + $0xc8] sm:$0xff]
        %v881 = vld [vmem:[%s213 + $0xd0] sm:$0xff]
        %v882 = vld [vmem:[%s213 + $0xd8] sm:$0xff]
        %v883 = vld [vmem:[%s213 + $0xe0] sm:$0xff]
        %v884 = vld [vmem:[%s213 + $0xe8] sm:$0xff]
        %v885 = vld [vmem:[%s213 + $0xf0] sm:$0xff]
        %v886 = vld [vmem:[%s213 + $0xf8] sm:$0xff]
        %vm887 = vcmp.lt.f32.partialorder %v855, 0.25
        %vm888 = vcmp.lt.f32.partialorder %v856, 0.25
        %vm889 = vcmp.lt.f32.partialorder %v857, 0.25
        %vm890 = vcmp.lt.f32.partialorder %v858, 0.25
        %vm891 = vcmp.lt.f32.partialorder %v859, 0.25
        %vm892 = vcmp.lt.f32.partialorder %v860, 0.25
        %vm893 = vcmp.lt.f32.partialorder %v861, 0.25
        %vm894 = vcmp.lt.f32.partialorder %v862, 0.25
        %vm895 = vcmp.lt.f32.partialorder %v863, 0.25
        %vm896 = vcmp.lt.f32.partialorder %v864, 0.25
        %vm897 = vcmp.lt.f32.partialorder %v865, 0.25
        %vm898 = vcmp.lt.f32.partialorder %v866, 0.25
        %vm899 = vcmp.lt.f32.partialorder %v867, 0.25
        %vm900 = vcmp.lt.f32.partialorder %v868, 0.25
        %vm901 = vcmp.lt.f32.partialorder %v869, 0.25
        %vm902 = vcmp.lt.f32.partialorder %v870, 0.25
        %vm903 = vcmp.lt.f32.partialorder %v871, 0.25
        %vm904 = vcmp.lt.f32.partialorder %v872, 0.25
        %vm905 = vcmp.lt.f32.partialorder %v873, 0.25
        %vm906 = vcmp.lt.f32.partialorder %v874, 0.25
        %vm907 = vcmp.lt.f32.partialorder %v875, 0.25
        %vm908 = vcmp.lt.f32.partialorder %v876, 0.25
        %vm909 = vcmp.lt.f32.partialorder %v877, 0.25
        %vm910 = vcmp.lt.f32.partialorder %v878, 0.25
        %vm911 = vcmp.lt.f32.partialorder %v879, 0.25
        %vm912 = vcmp.lt.f32.partialorder %v880, 0.25
        %vm913 = vcmp.lt.f32.partialorder %v881, 0.25
        %vm914 = vcmp.lt.f32.partialorder %v882, 0.25
        %vm915 = vcmp.lt.f32.partialorder %v883, 0.25
        %vm916 = vcmp.lt.f32.partialorder %v884, 0.25
        %vm917 = vcmp.lt.f32.partialorder %v885, 0.25
        %vm918 = vcmp.lt.f32.partialorder %v886, 0.25
        %v919 = vsel %vm887, %v728, 0.0
        %v920 = vsel %vm888, %v730, 0.0
        %v921 = vsel %vm889, %v732, 0.0
        %v922 = vsel %vm890, %v734, 0.0
        %v923 = vsel %vm891, %v736, 0.0
        %v924 = vsel %vm892, %v738, 0.0
        %v925 = vsel %vm893, %v740, 0.0
        %v926 = vsel %vm894, %v742, 0.0
        %v927 = vsel %vm895, %v744, 0.0
        %v928 = vsel %vm896, %v746, 0.0
        %v929 = vsel %vm897, %v748, 0.0
        %v930 = vsel %vm898, %v750, 0.0
        %v931 = vsel %vm899, %v752, 0.0
        %v932 = vsel %vm900, %v754, 0.0
        %v933 = vsel %vm901, %v756, 0.0
        %v934 = vsel %vm902, %v758, 0.0
        %v935 = vsel %vm903, %v760, 0.0
        %v936 = vsel %vm904, %v762, 0.0
        %v937 = vsel %vm905, %v764, 0.0
        %v938 = vsel %vm906, %v766, 0.0
        %v939 = vsel %vm907, %v768, 0.0
        %v940 = vsel %vm908, %v770, 0.0
        %v941 = vsel %vm909, %v772, 0.0
        %v942 = vsel %vm910, %v774, 0.0
        %v943 = vsel %vm911, %v776, 0.0
        %v944 = vsel %vm912, %v778, 0.0
        %v945 = vsel %vm913, %v780, 0.0
        %v946 = vsel %vm914, %v782, 0.0
        %v947 = vsel %vm915, %v784, 0.0
        %v948 = vsel %vm916, %v786, 0.0
        %v949 = vsel %vm917, %v788, 0.0
        %v950 = vsel %vm918, %v790, 0.0
        %v951 = vpack.c.bf16 %v920, %v919
        %v952 = vpack.c.bf16 %v922, %v921
        %v953 = vpack.c.bf16 %v924, %v923
        %v954 = vpack.c.bf16 %v926, %v925
        %v955 = vpack.c.bf16 %v928, %v927
        %v956 = vpack.c.bf16 %v930, %v929
        %v957 = vpack.c.bf16 %v932, %v931
        %v958 = vpack.c.bf16 %v934, %v933
        %v959 = vpack.c.bf16 %v936, %v935
        %v960 = vpack.c.bf16 %v938, %v937
        %v961 = vpack.c.bf16 %v940, %v939
        %v962 = vpack.c.bf16 %v942, %v941
        %v963 = vpack.c.bf16 %v944, %v943
        %v964 = vpack.c.bf16 %v946, %v945
        %v965 = vpack.c.bf16 %v948, %v947
        %v966 = vpack.c.bf16 %v950, %v949
        %967 = vmatprep.subr.bf16.mxu0 0
        %968 = vmatpush1.bf16.msra.mxu0 %v461
        %969 = vmatprep.subr.bf16.mxu0 0
        %970 = vmatpush1.bf16.msra.mxu0 %v460
        %971 = vmatprep.subr.bf16.mxu0 0
        %972 = vmatpush1.bf16.msra.mxu0 %v459
        %973 = vmatprep.subr.bf16.mxu0 0
        %974 = vmatpush1.bf16.msra.mxu0 %v458
        %975 = vmatprep.subr.bf16.mxu0 0
        %976 = vmatpush1.bf16.msra.mxu0 %v457
        %977 = vmatprep.subr.bf16.mxu0 0
        %978 = vmatpush1.bf16.msra.mxu0 %v456
        %979 = vmatprep.subr.bf16.mxu0 0
        %980 = vmatpush1.bf16.msra.mxu0 %v455
        %981 = vmatprep.subr.bf16.mxu0 0
        %982 = vmatpush1.bf16.msra.mxu0 %v454
        %983 = vmatprep.subr.bf16.mxu0 0
        %984 = vmatpush2.bf16.msra.mxu0 0
        %985 = vmatprep.subr.bf16.mxu0 0
        %986 = vmatpush2.bf16.msra.mxu0 0
        %987 = vmatprep.subr.bf16.mxu0 0
        %988 = vmatpush2.bf16.msra.mxu0 0
        %989 = vmatprep.subr.bf16.mxu0 0
        %990 = vmatpush2.bf16.msra.mxu0 0
        %991 = vmatprep.subr.bf16.mxu0 0
        %992 = vmatpush2.bf16.msra.mxu0 0
        %993 = vmatprep.subr.bf16.mxu0 0
        %994 = vmatpush2.bf16.msra.mxu0 0
        %995 = vmatprep.subr.bf16.mxu0 0
        %996 = vmatpush2.bf16.msra.mxu0 0
        %997 = vmatprep.subr.bf16.mxu0 0
        %998 = vmatpush2.bf16.msra.mxu0 0
        %999 = vmatprep.mubr.bf16.mxu0 0
        %1000 = vmatmul.mubr.bf16.gmra.mxu0 %v951
        %v1001 = vpop.f32.mrf.mxu0
        %v1002 = vadd.f32 0.0, %v1001
        %v1003 = vpop.f32.mrf.mxu0
        %v1004 = vpop.f32.mrf.mxu0
        %v1005 = vadd.f32 0.0, %v1004
        %v1006 = vpop.f32.mrf.mxu0
        %1007 = vmatprep.mubr.bf16.mxu0 0
        %1008 = vmatmul.mubr.bf16.gmra.mxu0 %v952
        %v1009 = vpop.f32.mrf.mxu0
        %v1010 = vadd.f32 0.0, %v1009
        %v1011 = vpop.f32.mrf.mxu0
        %v1012 = vpop.f32.mrf.mxu0
        %v1013 = vadd.f32 0.0, %v1012
        %v1014 = vpop.f32.mrf.mxu0
        %1015 = vmatprep.mubr.bf16.mxu0 0
        %1016 = vmatmul.mubr.bf16.gmra.mxu0 %v953
        %v1017 = vpop.f32.mrf.mxu0
        %v1018 = vadd.f32 0.0, %v1017
        %v1019 = vpop.f32.mrf.mxu0
        %v1020 = vpop.f32.mrf.mxu0
        %v1021 = vadd.f32 0.0, %v1020
        %v1022 = vpop.f32.mrf.mxu0
        %1023 = vmatprep.mubr.bf16.mxu0 0
        %1024 = vmatmul.mubr.bf16.gmra.mxu0 %v954
        %v1025 = vpop.f32.mrf.mxu0
        %v1026 = vadd.f32 0.0, %v1025
        %v1027 = vpop.f32.mrf.mxu0
        %v1028 = vpop.f32.mrf.mxu0
        %v1029 = vadd.f32 0.0, %v1028
        %v1030 = vpop.f32.mrf.mxu0
        %1031 = vmatprep.mubr.bf16.mxu0 0
        %1032 = vmatmul.mubr.bf16.gmra.mxu0 %v955
        %v1033 = vpop.f32.mrf.mxu0
        %v1034 = vadd.f32 0.0, %v1033
        %v1035 = vpop.f32.mrf.mxu0
        %v1036 = vpop.f32.mrf.mxu0
        %v1037 = vadd.f32 0.0, %v1036
        %v1038 = vpop.f32.mrf.mxu0
        %1039 = vmatprep.mubr.bf16.mxu0 0
        %1040 = vmatmul.mubr.bf16.gmra.mxu0 %v956
        %v1041 = vpop.f32.mrf.mxu0
        %v1042 = vadd.f32 0.0, %v1041
        %v1043 = vpop.f32.mrf.mxu0
        %v1044 = vpop.f32.mrf.mxu0
        %v1045 = vadd.f32 0.0, %v1044
        %v1046 = vpop.f32.mrf.mxu0
        %1047 = vmatprep.mubr.bf16.mxu0 0
        %1048 = vmatmul.mubr.bf16.gmra.mxu0 %v957
        %v1049 = vpop.f32.mrf.mxu0
        %v1050 = vadd.f32 0.0, %v1049
        %v1051 = vpop.f32.mrf.mxu0
        %v1052 = vpop.f32.mrf.mxu0
        %v1053 = vadd.f32 0.0, %v1052
        %v1054 = vpop.f32.mrf.mxu0
        %1055 = vmatprep.mubr.bf16.mxu0 0
        %1056 = vmatmul.mubr.bf16.gmra.mxu0 %v958
        %v1057 = vpop.f32.mrf.mxu0
        %v1058 = vadd.f32 0.0, %v1057
        %v1059 = vpop.f32.mrf.mxu0
        %v1060 = vpop.f32.mrf.mxu0
        %v1061 = vadd.f32 0.0, %v1060
        %v1062 = vpop.f32.mrf.mxu0
        %1063 = vmatprep.mubr.bf16.mxu0 0
        %1064 = vmatmul.mubr.bf16.gmra.mxu0 %v959
        %v1065 = vpop.f32.mrf.mxu0
        %v1066 = vadd.f32 0.0, %v1065
        %v1067 = vpop.f32.mrf.mxu0
        %v1068 = vpop.f32.mrf.mxu0
        %v1069 = vadd.f32 0.0, %v1068
        %v1070 = vpop.f32.mrf.mxu0
        %1071 = vmatprep.mubr.bf16.mxu0 0
        %1072 = vmatmul.mubr.bf16.gmra.mxu0 %v960
        %v1073 = vpop.f32.mrf.mxu0
        %v1074 = vadd.f32 0.0, %v1073
        %v1075 = vpop.f32.mrf.mxu0
        %v1076 = vpop.f32.mrf.mxu0
        %v1077 = vadd.f32 0.0, %v1076
        %v1078 = vpop.f32.mrf.mxu0
        %1079 = vmatprep.mubr.bf16.mxu0 0
        %1080 = vmatmul.mubr.bf16.gmra.mxu0 %v961
        %v1081 = vpop.f32.mrf.mxu0
        %v1082 = vadd.f32 0.0, %v1081
        %v1083 = vpop.f32.mrf.mxu0
        %v1084 = vpop.f32.mrf.mxu0
        %v1085 = vadd.f32 0.0, %v1084
        %v1086 = vpop.f32.mrf.mxu0
        %1087 = vmatprep.mubr.bf16.mxu0 0
        %1088 = vmatmul.mubr.bf16.gmra.mxu0 %v962
        %v1089 = vpop.f32.mrf.mxu0
        %v1090 = vadd.f32 0.0, %v1089
        %v1091 = vpop.f32.mrf.mxu0
        %v1092 = vpop.f32.mrf.mxu0
        %v1093 = vadd.f32 0.0, %v1092
        %v1094 = vpop.f32.mrf.mxu0
        %1095 = vmatprep.mubr.bf16.mxu0 0
        %1096 = vmatmul.mubr.bf16.gmra.mxu0 %v963
        %v1097 = vpop.f32.mrf.mxu0
        %v1098 = vadd.f32 0.0, %v1097
        %v1099 = vpop.f32.mrf.mxu0
        %v1100 = vpop.f32.mrf.mxu0
        %v1101 = vadd.f32 0.0, %v1100
        %v1102 = vpop.f32.mrf.mxu0
        %1103 = vmatprep.mubr.bf16.mxu0 0
        %1104 = vmatmul.mubr.bf16.gmra.mxu0 %v964
        %v1105 = vpop.f32.mrf.mxu0
        %v1106 = vadd.f32 0.0, %v1105
        %v1107 = vpop.f32.mrf.mxu0
        %v1108 = vpop.f32.mrf.mxu0
        %v1109 = vadd.f32 0.0, %v1108
        %v1110 = vpop.f32.mrf.mxu0
        %1111 = vmatprep.mubr.bf16.mxu0 0
        %1112 = vmatmul.mubr.bf16.gmra.mxu0 %v965
        %v1113 = vpop.f32.mrf.mxu0
        %v1114 = vadd.f32 0.0, %v1113
        %v1115 = vpop.f32.mrf.mxu0
        %v1116 = vpop.f32.mrf.mxu0
        %v1117 = vadd.f32 0.0, %v1116
        %v1118 = vpop.f32.mrf.mxu0
        %1119 = vmatprep.mubr.bf16.mxu0 0
        %1120 = vmatmul.mubr.bf16.gmra.mxu0 %v966
        %v1121 = vpop.f32.mrf.mxu0
        %v1122 = vadd.f32 0.0, %v1121
        %v1123 = vpop.f32.mrf.mxu0
        %v1124 = vpop.f32.mrf.mxu0
        %v1125 = vadd.f32 0.0, %v1124
        %v1126 = vpop.f32.mrf.mxu0
        %1127 = vdwg.mxu0
        %v1128 = vrcp.pop %v792
        %v1129 = vmul.f32 4.0, %v1128
        %v1130 = vrcp.pop %v794
        %v1131 = vmul.f32 4.0, %v1130
        %v1132 = vrcp.pop %v796
        %v1133 = vmul.f32 4.0, %v1132
        %v1134 = vrcp.pop %v798
        %v1135 = vmul.f32 4.0, %v1134
        %v1136 = vrcp.pop %v800
        %v1137 = vmul.f32 4.0, %v1136
        %v1138 = vrcp.pop %v802
        %v1139 = vmul.f32 4.0, %v1138
        %v1140 = vrcp.pop %v804
        %v1141 = vmul.f32 4.0, %v1140
        %v1142 = vrcp.pop %v806
        %v1143 = vmul.f32 4.0, %v1142
        %v1144 = vrcp.pop %v808
        %v1145 = vmul.f32 4.0, %v1144
        %v1146 = vrcp.pop %v810
        %v1147 = vmul.f32 4.0, %v1146
        %v1148 = vrcp.pop %v812
        %v1149 = vmul.f32 4.0, %v1148
        %v1150 = vrcp.pop %v814
        %v1151 = vmul.f32 4.0, %v1150
        %v1152 = vrcp.pop %v816
        %v1153 = vmul.f32 4.0, %v1152
        %v1154 = vrcp.pop %v818
        %v1155 = vmul.f32 4.0, %v1154
        %v1156 = vrcp.pop %v820
        %v1157 = vmul.f32 4.0, %v1156
        %v1158 = vrcp.pop %v822
        %v1159 = vmul.f32 4.0, %v1158
        %v1160 = vrcp.pop %v824
        %v1161 = vmul.f32 4.0, %v1160
        %v1162 = vrcp.pop %v826
        %v1163 = vmul.f32 4.0, %v1162
        %v1164 = vrcp.pop %v828
        %v1165 = vmul.f32 4.0, %v1164
        %v1166 = vrcp.pop %v830
        %v1167 = vmul.f32 4.0, %v1166
        %v1168 = vrcp.pop %v832
        %v1169 = vmul.f32 4.0, %v1168
        %v1170 = vrcp.pop %v834
        %v1171 = vmul.f32 4.0, %v1170
        %v1172 = vrcp.pop %v836
        %v1173 = vmul.f32 4.0, %v1172
        %v1174 = vrcp.pop %v838
        %v1175 = vmul.f32 4.0, %v1174
        %v1176 = vrcp.pop %v840
        %v1177 = vmul.f32 4.0, %v1176
        %v1178 = vrcp.pop %v842
        %v1179 = vmul.f32 4.0, %v1178
        %v1180 = vrcp.pop %v844
        %v1181 = vmul.f32 4.0, %v1180
        %v1182 = vrcp.pop %v846
        %v1183 = vmul.f32 4.0, %v1182
        %v1184 = vrcp.pop %v848
        %v1185 = vmul.f32 4.0, %v1184
        %v1186 = vrcp.pop %v850
        %v1187 = vmul.f32 4.0, %v1186
        %v1188 = vrcp.pop %v852
        %v1189 = vmul.f32 4.0, %v1188
        %v1190 = vrcp.pop %v854
        %v1191 = vmul.f32 4.0, %v1190
        %v1192 = vmul.f32 %v1002, %v1129
        %v1193 = vmul.f32 %v1005, %v1131
        %v1194 = vmul.f32 %v1010, %v1133
        %v1195 = vmul.f32 %v1013, %v1135
        %v1196 = vmul.f32 %v1018, %v1137
        %v1197 = vmul.f32 %v1021, %v1139
        %v1198 = vmul.f32 %v1026, %v1141
        %v1199 = vmul.f32 %v1029, %v1143
        %v1200 = vmul.f32 %v1034, %v1145
        %v1201 = vmul.f32 %v1037, %v1147
        %v1202 = vmul.f32 %v1042, %v1149
        %v1203 = vmul.f32 %v1045, %v1151
        %v1204 = vmul.f32 %v1050, %v1153
        %v1205 = vmul.f32 %v1053, %v1155
        %v1206 = vmul.f32 %v1058, %v1157
        %v1207 = vmul.f32 %v1061, %v1159
        %v1208 = vmul.f32 %v1066, %v1161
        %v1209 = vmul.f32 %v1069, %v1163
        %v1210 = vmul.f32 %v1074, %v1165
        %v1211 = vmul.f32 %v1077, %v1167
        %v1212 = vmul.f32 %v1082, %v1169
        %v1213 = vmul.f32 %v1085, %v1171
        %v1214 = vmul.f32 %v1090, %v1173
        %v1215 = vmul.f32 %v1093, %v1175
        %v1216 = vmul.f32 %v1098, %v1177
        %v1217 = vmul.f32 %v1101, %v1179
        %v1218 = vmul.f32 %v1106, %v1181
        %v1219 = vmul.f32 %v1109, %v1183
        %v1220 = vmul.f32 %v1114, %v1185
        %v1221 = vmul.f32 %v1117, %v1187
        %v1222 = vmul.f32 %v1122, %v1189
        %v1223 = vmul.f32 %v1125, %v1191
        %1224 = vst [vmem:[%s240] sm:$0xff] %v1192
        %1225 = vst [vmem:[%s240 + $0x8] sm:$0xff] %v1193
        %1226 = vst [vmem:[%s240 + $0x10] sm:$0xff] %v1194
        %1227 = vst [vmem:[%s240 + $0x18] sm:$0xff] %v1195
        %1228 = vst [vmem:[%s240 + $0x20] sm:$0xff] %v1196
        %1229 = vst [vmem:[%s240 + $0x28] sm:$0xff] %v1197
        %1230 = vst [vmem:[%s240 + $0x30] sm:$0xff] %v1198
        %1231 = vst [vmem:[%s240 + $0x38] sm:$0xff] %v1199
        %1232 = vst [vmem:[%s240 + $0x40] sm:$0xff] %v1200
        %1233 = vst [vmem:[%s240 + $0x48] sm:$0xff] %v1201
        %1234 = vst [vmem:[%s240 + $0x50] sm:$0xff] %v1202
        %1235 = vst [vmem:[%s240 + $0x58] sm:$0xff] %v1203
        %1236 = vst [vmem:[%s240 + $0x60] sm:$0xff] %v1204
        %1237 = vst [vmem:[%s240 + $0x68] sm:$0xff] %v1205
        %1238 = vst [vmem:[%s240 + $0x70] sm:$0xff] %v1206
        %1239 = vst [vmem:[%s240 + $0x78] sm:$0xff] %v1207
        %1240 = vst [vmem:[%s240 + $0x80] sm:$0xff] %v1208
        %1241 = vst [vmem:[%s240 + $0x88] sm:$0xff] %v1209
        %1242 = vst [vmem:[%s240 + $0x90] sm:$0xff] %v1210
        %1243 = vst [vmem:[%s240 + $0x98] sm:$0xff] %v1211
        %1244 = vst [vmem:[%s240 + $0xa0] sm:$0xff] %v1212
        %1245 = vst [vmem:[%s240 + $0xa8] sm:$0xff] %v1213
        %1246 = vst [vmem:[%s240 + $0xb0] sm:$0xff] %v1214
        %1247 = vst [vmem:[%s240 + $0xb8] sm:$0xff] %v1215
        %1248 = vst [vmem:[%s240 + $0xc0] sm:$0xff] %v1216
        %1249 = vst [vmem:[%s240 + $0xc8] sm:$0xff] %v1217
        %1250 = vst [vmem:[%s240 + $0xd0] sm:$0xff] %v1218
        %1251 = vst [vmem:[%s240 + $0xd8] sm:$0xff] %v1219
        %1252 = vst [vmem:[%s240 + $0xe0] sm:$0xff] %v1220
        %1253 = vst [vmem:[%s240 + $0xe8] sm:$0xff] %v1221
        %1254 = vst [vmem:[%s240 + $0xf0] sm:$0xff] %v1222
        %1255 = vst [vmem:[%s240 + $0xf8] sm:$0xff] %v1223
        %s1256 = sand.u32 %s102, 1
        %s1257 = scalar_lea.sflag [#allocation4], %s1256
        %s1258 = sand.u32 %s102, 1
        %s1259 = smul.addr %s1258, 256
        %s1260 = scalar_lea.vmem [#allocation8], %s1259
        // Predicated region
        $region45: #{tpu_custom_call.1} parent=31 // pred_check
          %p1261 = pneg %p112
        $region46: #{tpu_custom_call.1} parent=31 // pred_check_branch
          %1263 = sbr.rel (%p1261) target = $region48
        $region47: #{tpu_custom_call.1} parent=31 // pred_region
          %s1264 = smul.u32 32, %s21
          %s1266 = ssub.s32 4096, 4096
          %1267 = vsyncadd %s1257, %s1266
          %s1268 = smul.addr %s1264, 128
          %s1269 = scalar_lea.hbm %s3, %s1268
          %s1270 = sshll.u32 %s1260, 4
          %s1271 = int_to_ptr.vmem [resolvable:$true] %s1270
          %1276 = dma.vmem_to_hbm [thread:$0]  %s1271, 4096, %s1269, %s1257, 128, 128, 8
        $region48: #{tpu_custom_call.1} parent=31 // pred_fallthru
          _
      $region32: #{tpu_custom_call.1} parent=5 // pred_fallthru
        _
      %p1277 = scmp.le.s32.totalorder 2, %s16
      // Predicated region
      $region49: #{tpu_custom_call.1} parent=5 // pred_check
        %p1278 = pneg %p1277
      $region50: #{tpu_custom_call.1} parent=5 // pred_check_branch
        %1280 = sbr.rel (%p1278) target = $region52
      $region51: #{tpu_custom_call.1} parent=5 // pred_region
        %s1281 = ssub.s32 %s16, 2
        // Predicated region
        $region53: #{tpu_custom_call.1} parent=51 // pred_check
          %p1282 = pneg %p118
        $region54: #{tpu_custom_call.1} parent=51 // pred_check_branch
          %1284 = sbr.rel (%p1282) target = $region56
        $region55: #{tpu_custom_call.1} parent=51 // pred_region
          %s1285 = sand.u32 %s103, 1
          %s1286 = scalar_lea.sflag [#allocation4], %s1285
          %s1287 = sand.u32 %s103, 1
          %s1288 = smul.addr %s1287, 256
          %s1289 = scalar_lea.vmem [#allocation8], %s1288
          %1290 = dma.done %s1286, 4096
        $region56: #{tpu_custom_call.1} parent=51 // pred_fallthru
          _
      $region52: #{tpu_custom_call.1} parent=5 // pred_fallthru
        _
    $region6: #{tpu_custom_call.1} parent=1 // loop_footer
      %s20 = sadd.s32 1, %s16
    $region7: #{tpu_custom_call.1} parent=1 // loop_footer_branch
      %15 = sbr.rel target = $region3
    $region8: #{tpu_custom_call.1} parent=1 // loop_exit
      _
    %1291 = vsyncpa [#allocation3], 1
    %s1292 = scalar_lea.sflag [#allocation3], 1
    %1293 = vsyncpa %s1292, 1
    %1294 = vsyncpa [#allocation6], 1
    %1295 = vsyncpa [#allocation4], 1
    %s1296 = scalar_lea.sflag [#allocation4], 1
    %1297 = vsyncpa %s1296, 1

</llo_original>
